<compile_context>
chip_gen: v5e
topology: v5e:2x2
jax: 0.10.0
libtpu: 0.0.40
codegen_flags: <defaults>
</compile_context>

<pallas_src>
import functools

import jax
import jax.numpy as jnp
from jax.experimental import pallas as pl
from jax.experimental.pallas import tpu as pltpu


def _round_up(x, m):
    return (x + m - 1) // m * m


def _pick_tile(d, cap, align):
    """Largest tile <= cap (multiple of `align`) minimizing padding of dim d.

    If the (alignment-rounded) dim fits under the cap, use it whole (single
    tile, zero re-streaming along that axis)."""
    dp = _round_up(max(int(d), 1), align)
    if dp <= cap:
        return dp
    best_t, best_pad = align, _round_up(dp, align)
    top = cap - cap % align
    for t in range(top, align - 1, -align):
        padded = _round_up(dp, t)
        if padded < best_pad or (padded == best_pad and t > best_t):
            best_t, best_pad = t, padded
    return best_t


def _chip_config():
    """Per-generation tile caps and scoped-VMEM budget."""
    try:
        kind = jax.devices()[0].device_kind.lower()
    except Exception:  # pragma: no cover - defensive
        kind = ""
    if "v7" in kind:
        # 64 MiB VMEM per TensorCore, 2 TCs/chip, 3.2 TB/s HBM.
        return dict(vmem_limit=48 * 1024 * 1024, two_cores=True,
                    tm_cap=512, tn_cap=1024, tk_cap_f32=1024, tk_cap_bf16=2048)
    if any(t in kind for t in ("v5 lite", "v5e", "v5lite", "v6e", "v6 lite", "v6")):
        # 128 MiB VMEM, 1 TC; lowest BW:compute ratio -> push W tiles big.
        return dict(vmem_limit=100 * 1024 * 1024, two_cores=False,
                    tm_cap=1024, tn_cap=2048, tk_cap_f32=1024, tk_cap_bf16=2048)
    # Unknown chip: use the v7x-safe (smallest-VMEM) configuration.
    return dict(vmem_limit=48 * 1024 * 1024, two_cores=False,
                tm_cap=512, tn_cap=1024, tk_cap_f32=1024, tk_cap_bf16=1024)


# ----------------------------- kernels -------------------------------------


def _fc_relu_kernel_inplace(x_ref, w_ref, b_ref, o_ref):
    """f32 output: accumulate directly into the VMEM-resident output block."""
    k = pl.program_id(2)

    @pl.when(k == 0)
    def _init():
        o_ref[...] = jnp.zeros_like(o_ref)

    o_ref[...] += jnp.dot(
        x_ref[...], w_ref[...], preferred_element_type=jnp.float32
    )

    @pl.when(k == pl.num_programs(2) - 1)
    def _finalize():
        o_ref[...] = jnp.maximum(o_ref[...] + b_ref[...].astype(jnp.float32), 0.0)


def _fc_relu_kernel_acc(x_ref, w_ref, b_ref, o_ref, acc_ref):
    """Low-precision output: keep the f32 accumulator in scratch."""
    k = pl.program_id(2)

    @pl.when(k == 0)
    def _init():
        acc_ref[...] = jnp.zeros_like(acc_ref)

    acc_ref[...] += jnp.dot(
        x_ref[...], w_ref[...], preferred_element_type=jnp.float32
    )

    @pl.when(k == pl.num_programs(2) - 1)
    def _finalize():
        y = acc_ref[...] + b_ref[...].astype(jnp.float32)
        o_ref[...] = jnp.maximum(y, 0.0).astype(o_ref.dtype)


# --------------------------- forward wrapper --------------------------------


@functools.partial(
    jax.jit,
    static_argnames=("n", "k", "tn", "tk", "tm_cap", "mxu_dtype", "vmem_limit"),
)
def _fc_relu_forward(x, w_p, b_p, *, n, k, tn, tk, tm_cap, mxu_dtype, vmem_limit):
    """relu(x @ w + b) with pre-padded / pre-cast weights (w_p, b_p)."""
    m, kx = x.shape
    assert kx == k, f"expected in_features={k}, got {kx}"
    kp, np_ = w_p.shape
    out_dtype = x.dtype

    in_isz = (jnp.dtype(mxu_dtype).itemsize if mxu_dtype is not None
              else jnp.dtype(out_dtype).itemsize)
    out_isz = jnp.dtype(out_dtype).itemsize
    # bf16 packs 2 rows per sublane -> keep tm a multiple of 16 on that path.
    align_m = 16 if in_isz == 2 else 8

    # Prefer tm = full padded batch so W streams from HBM exactly once.
    tm = _pick_tile(m, tm_cap, align_m)

    use_scratch_acc = out_dtype != jnp.float32

    def working_set(tm_):
        acc = tm_ * tn * 4 if use_scratch_acc else 0
        return (2 * (tm_ * tk * in_isz + tk * tn * in_isz + tn * 4)
                + 2 * tm_ * tn * out_isz + acc)

    # Safety valve: shrink tm if the double-buffered working set would not fit.
    while tm > align_m and working_set(tm) > int(0.8 * vmem_limit):
        tm = max(align_m, _round_up(tm // 2, align_m))

    mp = _round_up(m, tm)

    # Only the activation is padded per call (weights were padded at init);
    # zero-padding K is exact for the dot, padded M rows are sliced off below.
    if (mp, kp) != (m, kx):
        x = jnp.pad(x, ((0, mp - m), (0, kp - kx)))
    if mxu_dtype is not None and x.dtype != mxu_dtype:
        x = x.astype(mxu_dtype)

    grid = (mp // tm, np_ // tn, kp // tk)

    cost = pl.CostEstimate(
        flops=2 * mp * kp * np_,
        transcendentals=0,
        bytes_accessed=(x.size * x.dtype.itemsize
                        + w_p.size * w_p.dtype.itemsize
                        + b_p.size * b_p.dtype.itemsize
                        + mp * np_ * out_isz),
    )

    in_specs = [
        pl.BlockSpec((tm, tk), lambda i, j, kk: (i, kk)),  # x tile
        pl.BlockSpec((tk, tn), lambda i, j, kk: (kk, j)),  # w tile
        pl.BlockSpec((1, tn), lambda i, j, kk: (0, j)),    # bias row
    ]
    out_spec = pl.BlockSpec((tm, tn), lambda i, j, kk: (i, j))

    if use_scratch_acc:
        kernel = _fc_relu_kernel_acc
        scratch = [pltpu.VMEM((tm, tn), jnp.float32)]
    else:
        kernel = _fc_relu_kernel_inplace
        scratch = []

    y = pl.pallas_call(
        kernel,
        out_shape=jax.ShapeDtypeStruct((mp, np_), out_dtype),
        grid_spec=pltpu.PrefetchScalarGridSpec(
            num_scalar_prefetch=0,
            grid=grid,
            in_specs=in_specs,
            out_specs=out_spec,
            scratch_shapes=scratch,
        ),
        compiler_params=pltpu.CompilerParams(
            dimension_semantics=("parallel", "parallel", "arbitrary"),
            vmem_limit_bytes=int(vmem_limit),
        ),
        cost_estimate=cost,
    )(x, w_p, b_p)

    if (mp, np_) != (m, n):
        y = y[:m, :n]
    return y


class FullyConnectedReLU:
    """Pallas-TPU equivalent of the PyTorch FullyConnectedLayer forward.

    w: (in_features, out_features)  (i.e. torch's W transposed)
    b: (out_features,) or (1, out_features)
    mxu_dtype: None (keep input dtype on the MXU), a dtype like jnp.bfloat16,
               or "auto" (bf16 for large layers, f32-precision otherwise).
               The accumulator and the bias/ReLU epilogue are always f32.
    """

    def __init__(self, w, b, *, mxu_dtype="auto"):
        k, n = w.shape
        b = jnp.reshape(jnp.asarray(b), (1, n))
        cfg = _chip_config()

        if mxu_dtype == "auto":
            # bf16 MXU inputs pay off on compute-bound (large) layers.
            mxu_dtype = jnp.bfloat16 if (k * n >= 512 * 512) else None
        self.mxu_dtype = mxu_dtype

        in_isz = (jnp.dtype(mxu_dtype).itemsize if mxu_dtype is not None
                  else jnp.dtype(w.dtype).itemsize)
        tk_cap = cfg["tk_cap_bf16"] if in_isz == 2 else cfg["tk_cap_f32"]

        tn = _pick_tile(n, cfg["tn_cap"], 128)
        tk = _pick_tile(k, tk_cap, 128)
        np_, kp = _round_up(n, tn), _round_up(k, tk)

        # v7x: 2 TensorCores share the "parallel" grid axes; make sure there
        # are at least 2 output tiles when everything would fit in one.
        if cfg["two_cores"] and np_ // tn == 1 and np_ % 256 == 0 and np_ >= 256:
            tn = np_ // 2

        # Pre-pad and pre-cast the static parameters ONCE (hoisted out of the
        # per-call path: no weight re-copy / re-cast on every forward).
        if (kp, np_) != (k, n):
            w = jnp.pad(w, ((0, kp - k), (0, np_ - n)))
            b = jnp.pad(b, ((0, 0), (0, np_ - n)))
        if mxu_dtype is not None:
            w = w.astype(mxu_dtype)
        self.w_p = jnp.asarray(w)
        self.b_p = jnp.asarray(b)  # bias stays in its original (f32) dtype

        self.in_features, self.out_features = k, n
        self.tn, self.tk = tn, tk
        self.tm_cap = cfg["tm_cap"]
        self.vmem_limit = cfg["vmem_limit"]
        # TODO(synk): optionally set pipeline_mode=pl.Buffered(3) on the W spec
        # if profiling shows exposed W DMA at very large tn/tk.

    def __call__(self, x):
        return _fc_relu_forward(
            x, self.w_p, self.b_p,
            n=self.out_features, k=self.in_features,
            tn=self.tn, tk=self.tk, tm_cap=self.tm_cap,
            mxu_dtype=self.mxu_dtype, vmem_limit=self.vmem_limit,
        )


def init_params(key, in_features, out_features, dtype=jnp.float32):
    """nn.Linear-style init: U(-1/sqrt(in), 1/sqrt(in)); weight stored (in, out)."""
    kw, kb = jax.random.split(key)
    bound = 1.0 / jnp.sqrt(jnp.array(in_features, dtype))
    w = jax.random.uniform(kw, (in_features, out_features), dtype,
                           minval=-bound, maxval=bound)
    b = jax.random.uniform(kb, (1, out_features), dtype,
                           minval=-bound, maxval=bound)
    return w, b


if __name__ == "__main__":
    key = jax.random.PRNGKey(0)
    k1, k2, k3, k4, k5, k6 = jax.random.split(key, 6)

    # Test 1: small shapes consistent with the module (single tile after padding).
    B, K, N = 8, 32, 16
    x = jax.random.normal(k1, (B, K), jnp.float32)
    w, b = init_params(k2, K, N)
    layer = FullyConnectedReLU(w, b)            # auto -> f32-precision path here
    y = layer(x)
    jax.block_until_ready(y)
    y_ref = jnp.maximum(x @ w + b, 0.0)
    assert y.shape == (B, N)
    assert jnp.allclose(y, y_ref, atol=1e-5, rtol=1e-5)

    # Test 2: awkward 128-multiple shapes; exact-fit tiles (K=640 no longer padded to 1024).
    B2, K2, N2 = 512, 640, 384
    x2 = jax.random.normal(k3, (B2, K2), jnp.float32)
    w2, b2 = init_params(k4, K2, N2)
    layer2 = FullyConnectedReLU(w2, b2)
    y2 = layer2(x2)
    jax.block_until_ready(y2)
    y2_ref = jnp.maximum(x2 @ w2 + b2, 0.0)
    assert y2.shape == (B2, N2)
    assert jnp.allclose(y2, y2_ref, atol=1e-4, rtol=1e-4)

    # Test 3: production-style layer on the bf16 MXU path (f32 accumulate).
    B3, K3, N3 = 256, 1024, 1024
    x3 = jax.random.normal(k5, (B3, K3), jnp.float32)
    w3, b3 = init_params(k6, K3, N3)
    layer3 = FullyConnectedReLU(w3, b3, mxu_dtype=jnp.bfloat16)
    y3 = layer3(x3)
    jax.block_until_ready(y3)
    y3_ref = jnp.maximum(
        x3.astype(jnp.bfloat16).astype(jnp.float32)
        @ w3.astype(jnp.bfloat16).astype(jnp.float32) + b3, 0.0)
    assert y3.shape == (B3, N3)
    assert jnp.allclose(y3, y3_ref, atol=2e-2, rtol=2e-2)

    print("KERNEL_OK")
</pallas_src>

<mosaic_0001>
module attributes {stable_mosaic.version = 11 : i64} {
  func.func @_fc_relu_kernel_inplace(%arg0: i32, %arg1: i32, %arg2: i32, %arg3: memref<8x128xf32, #tpu.memory_space<vmem>>, %arg4: memref<128x128xf32, #tpu.memory_space<vmem>>, %arg5: memref<1x128xf32, #tpu.memory_space<vmem>>, %arg6: memref<8x128xf32, #tpu.memory_space<vmem>>) attributes {dimension_semantics = [#tpu.dimension_semantics<parallel>, #tpu.dimension_semantics<parallel>, #tpu.dimension_semantics<arbitrary>], iteration_bounds = array<i64: 1, 1, 1>, scalar_prefetch = 0 : i64, scratch_operands = 0 : i64, tpu.core_type = #tpu.core_type<tc>, window_params = [{transform_indices = @transform_0, window_bounds = array<i64: 8, 128>}, {transform_indices = @transform_1, window_bounds = array<i64: 128, 128>}, {transform_indices = @transform_2, window_bounds = array<i64: 1, 128>}, {transform_indices = @transform_3, window_bounds = array<i64: 8, 128>}]} {
    %c0_i32 = arith.constant 0 : i32
    %0 = arith.cmpi eq, %arg2, %c0_i32 : i32
    %1 = arith.extui %0 : i1 to i32
    %c0_i32_0 = arith.constant 0 : i32
    %2 = arith.cmpi ne, %1, %c0_i32_0 : i32
    scf.if %2 {
      %cst_10 = arith.constant 0.000000e+00 : f32
      %12 = vector.broadcast %cst_10 : f32 to vector<8x128xf32>
      %c0_11 = arith.constant 0 : index
      %c0_12 = arith.constant 0 : index
      %13 = vector.load %arg6[%c0_11, %c0_12] : memref<8x128xf32, #tpu.memory_space<vmem>>, vector<8x128xf32>
      tpu.vector_store %arg6[%c0_11, %c0_12], %12 {strides = array<i32>} : memref<8x128xf32, #tpu.memory_space<vmem>>, vector<8x128xf32>,
    } else {
    }
    %c0 = arith.constant 0 : index
    %c0_1 = arith.constant 0 : index
    %3 = vector.load %arg6[%c0, %c0_1] : memref<8x128xf32, #tpu.memory_space<vmem>>, vector<8x128xf32>
    %c0_2 = arith.constant 0 : index
    %c0_3 = arith.constant 0 : index
    %4 = vector.load %arg3[%c0_2, %c0_3] : memref<8x128xf32, #tpu.memory_space<vmem>>, vector<8x128xf32>
    %c0_4 = arith.constant 0 : index
    %c0_5 = arith.constant 0 : index
    %5 = vector.load %arg4[%c0_4, %c0_5] : memref<128x128xf32, #tpu.memory_space<vmem>>, vector<128x128xf32>
    %cst = arith.constant dense<0.000000e+00> : vector<8x128xf32>
    %6 = tpu.matmul %4, %5, %cst {dimension_numbers = #tpu.dot_dimension_numbers<[1], [0], [0], [1], [0, 0, 1, 1], [], []>} : vector<8x128xf32>, vector<128x128xf32>, vector<8x128xf32> -> vector<8x128xf32>
    %7 = arith.addf %3, %6 : vector<8x128xf32>
    %c0_6 = arith.constant 0 : index
    %c0_7 = arith.constant 0 : index
    %8 = vector.load %arg6[%c0_6, %c0_7] : memref<8x128xf32, #tpu.memory_space<vmem>>, vector<8x128xf32>
    tpu.vector_store %arg6[%c0_6, %c0_7], %7 {strides = array<i32>} : memref<8x128xf32, #tpu.memory_space<vmem>>, vector<8x128xf32>,
    %c0_i32_8 = arith.constant 0 : i32
    %9 = arith.cmpi eq, %arg2, %c0_i32_8 : i32
    %10 = arith.extui %9 : i1 to i32
    %c0_i32_9 = arith.constant 0 : i32
    %11 = arith.cmpi ne, %10, %c0_i32_9 : i32
    scf.if %11 {
      %c0_10 = arith.constant 0 : index
      %c0_11 = arith.constant 0 : index
      %12 = vector.load %arg6[%c0_10, %c0_11] : memref<8x128xf32, #tpu.memory_space<vmem>>, vector<8x128xf32>
      %c0_12 = arith.constant 0 : index
      %c0_13 = arith.constant 0 : index
      %13 = vector.load %arg5[%c0_12, %c0_13] : memref<1x128xf32, #tpu.memory_space<vmem>>, vector<1x128xf32>
      %14 = vector.broadcast %13 : vector<1x128xf32> to vector<8x128xf32>
      %15 = arith.addf %12, %14 : vector<8x128xf32>
      %cst_14 = arith.constant 0.000000e+00 : f32
      %16 = vector.broadcast %cst_14 : f32 to vector<8x128xf32>
      %17 = arith.maximumf %15, %16 : vector<8x128xf32>
      %c0_15 = arith.constant 0 : index
      %c0_16 = arith.constant 0 : index
      %18 = vector.load %arg6[%c0_15, %c0_16] : memref<8x128xf32, #tpu.memory_space<vmem>>, vector<8x128xf32>
      tpu.vector_store %arg6[%c0_15, %c0_16], %17 {strides = array<i32>} : memref<8x128xf32, #tpu.memory_space<vmem>>, vector<8x128xf32>,
    } else {
    }
    return
  }
  func.func @transform_0(%arg0: i32, %arg1: i32, %arg2: i32) -> (i32, i32) {
    %c0_i32 = arith.constant 0 : i32
    return %arg0, %arg2 : i32, i32
  }
  func.func @transform_1(%arg0: i32, %arg1: i32, %arg2: i32) -> (i32, i32) {
    %c0_i32 = arith.constant 0 : i32
    return %arg2, %arg1 : i32, i32
  }
  func.func @transform_2(%arg0: i32, %arg1: i32, %arg2: i32) -> (i32, i32) {
    %c0_i32 = arith.constant 0 : i32
    %c0_i32_0 = arith.constant 0 : i32
    return %c0_i32, %arg1 : i32, i32
  }
  func.func @transform_3(%arg0: i32, %arg1: i32, %arg2: i32) -> (i32, i32) {
    %c0_i32 = arith.constant 0 : i32
    return %arg0, %arg1 : i32, i32
  }
}

</mosaic_0001>

<llo_original>
// kernel: _fc_relu_forward.1
$region0: #{_fc_relu_forward.1}
  #allocation0 [shape = 'u32[]', space=smem, size = 0x4, offset = 0x4, fixed_abs, tag = 'smem constant byte address 0x4 - core index']
  #allocation1 [shape = 'u32[72,128]{1,0:T(1,128)}', space=vmem, size = 0x9000, scoped, tag = 'internal scratch']
  %s0 = inlined_call_operand.vmem [shape: f32[8,128], index: 0, kind: input, shape index: {}]
  %s1 = inlined_call_operand.hbm [shape: f32[128,128], index: 1, kind: input, shape index: {}]
  %s2 = inlined_call_operand.vmem [shape: f32[1,128], index: 2, kind: input, shape index: {}]
  %s3 = inlined_call_operand.hbm [shape: f32[8,128], index: 3, kind: output, shape index: {}]
  %s4 = sld [smem:[#allocation0]]
  $region34: #{_fc_relu_forward.1} parent=0
    _
  %s6 = ssub.s32 1, %s4
  %s7 = scalar_select 0, %s6, %s4
  $region1: #{_fc_relu_forward.1} parent=0
    #allocation2 [shape = 'u8[65536]{0}', space=vmem, size = 0x10000, scoped, tag = 'input window, operand 1, single buffered']
    #allocation3 [shape = 's32[1]{0}', space=sflag, size = 0x4, scoped, tag = 'scoped memory for _fc_relu_forward.1']
    #allocation4 [shape = 's32[1]{0}', space=sflag, size = 0x4, scoped, tag = 'scoped memory for _fc_relu_forward.1']
    #allocation5 [shape = 'u8[4096]{0}', space=vmem, size = 0x1000, scoped, tag = 'output window, operand 0, single buffered']
    %8 = vsyncpa [#allocation3], 0
    %9 = vsyncpa [#allocation4], 0
    // Predicated region
    $region2: #{_fc_relu_forward.1} parent=1 // pred_check
      _
    $region3: #{_fc_relu_forward.1} parent=1 // pred_check_branch
      %11 = sbr.rel (0) target = $region5
    $region4: #{_fc_relu_forward.1} parent=1 // pred_region
      _
    $region5: #{_fc_relu_forward.1} parent=1 // pred_fallthru
      _
    // Predicated region
    $region6: #{_fc_relu_forward.1} parent=1 // pred_check
      _
    $region7: #{_fc_relu_forward.1} parent=1 // pred_check_branch
      %13 = sbr.rel (0) target = $region9
    $region8: #{_fc_relu_forward.1} parent=1 // pred_region
      %15 = vsyncadd [#allocation3], 0
      %s16 = sshll.u32 %s1, 4
      %s17 = int_to_ptr.hbm [resolvable:$true] %s16
      %s18 = sshll.u32 [#allocation2], 4
      %s19 = int_to_ptr.vmem [resolvable:$true] %s18
      %24 = dma.hbm_to_vmem [thread:$0]  %s17, 2048, %s19, [#allocation3], 128, 128, 8
    $region9: #{_fc_relu_forward.1} parent=1 // pred_fallthru
      _
    // Predicated region
    $region10: #{_fc_relu_forward.1} parent=1 // pred_check
      _
    $region11: #{_fc_relu_forward.1} parent=1 // pred_check_branch
      %26 = sbr.rel (0) target = $region13
    $region12: #{_fc_relu_forward.1} parent=1 // pred_region
      _
    $region13: #{_fc_relu_forward.1} parent=1 // pred_fallthru
      _
    // Predicated region
    $region14: #{_fc_relu_forward.1} parent=1 // pred_check
      _
    $region15: #{_fc_relu_forward.1} parent=1 // pred_check_branch
      %28 = sbr.rel (0) target = $region17
    $region16: #{_fc_relu_forward.1} parent=1 // pred_region
      %30 = dma.done [#allocation3], 2048
    $region17: #{_fc_relu_forward.1} parent=1 // pred_fallthru
      _
    %p31 = scmp.eq.s32.totalorder 0, 0
    // Predicated region
    $region18: #{_fc_relu_forward.1} parent=1 // pred_check
      %p32 = pneg %p31
    $region19: #{_fc_relu_forward.1} parent=1 // pred_check_branch
      %34 = sbr.rel (%p32) target = $region21
    $region20: #{_fc_relu_forward.1} parent=1 // pred_region
      %35 = vst [vmem:[#allocation5] sm:$0xff] 0.0
    $region21: #{_fc_relu_forward.1} parent=1 // pred_fallthru
      _
    %v36 = vld [vmem:[#allocation5] sm:$0xff]
    %v37 = vld [vmem:[%s0] sm:$0xff]
    %v38 = vld [vmem:[#allocation2] sm:$0xff]
    %v39 = vld [vmem:[#allocation2 + $0x8] sm:$0xff]
    %v40 = vld [vmem:[#allocation2 + $0x10] sm:$0xff]
    %v41 = vld [vmem:[#allocation2 + $0x18] sm:$0xff]
    %v42 = vld [vmem:[#allocation2 + $0x20] sm:$0xff]
    %v43 = vld [vmem:[#allocation2 + $0x28] sm:$0xff]
    %v44 = vld [vmem:[#allocation2 + $0x30] sm:$0xff]
    %v45 = vld [vmem:[#allocation2 + $0x38] sm:$0xff]
    %v46 = vld [vmem:[#allocation2 + $0x40] sm:$0xff]
    %v47 = vld [vmem:[#allocation2 + $0x48] sm:$0xff]
    %v48 = vld [vmem:[#allocation2 + $0x50] sm:$0xff]
    %v49 = vld [vmem:[#allocation2 + $0x58] sm:$0xff]
    %v50 = vld [vmem:[#allocation2 + $0x60] sm:$0xff]
    %v51 = vld [vmem:[#allocation2 + $0x68] sm:$0xff]
    %v52 = vld [vmem:[#allocation2 + $0x70] sm:$0xff]
    %v53 = vld [vmem:[#allocation2 + $0x78] sm:$0xff]
    %54 = vmatpush.msra.mxu0 %v53
    %55 = vmatpush.msra.mxu0 %v52
    %56 = vmatpush.msra.mxu0 %v51
    %57 = vmatpush.msra.mxu0 %v50
    %58 = vmatpush.msra.mxu0 %v49
    %59 = vmatpush.msra.mxu0 %v48
    %60 = vmatpush.msra.mxu0 %v47
    %61 = vmatpush.msra.mxu0 %v46
    %62 = vmatpush.msra.mxu0 %v45
    %63 = vmatpush.msra.mxu0 %v44
    %64 = vmatpush.msra.mxu0 %v43
    %65 = vmatpush.msra.mxu0 %v42
    %66 = vmatpush.msra.mxu0 %v41
    %67 = vmatpush.msra.mxu0 %v40
    %68 = vmatpush.msra.mxu0 %v39
    %69 = vmatpush.msra.mxu0 %v38
    %70 = vmatmul.f32.gmra.mxu0 %v37
    %v71 = vpop.f32.mrf.mxu0
    %v72 = vadd.f32 0.0, %v71
    %73 = vdwg.mxu0
    %v74 = vadd.f32 %v36, %v72
    %75 = vst [vmem:[#allocation5] sm:$0xff] %v74
    // Predicated region
    $region22: #{_fc_relu_forward.1} parent=1 // pred_check
      %p76 = pneg %p31
    $region23: #{_fc_relu_forward.1} parent=1 // pred_check_branch
      %78 = sbr.rel (%p76) target = $region25
    $region24: #{_fc_relu_forward.1} parent=1 // pred_region
      %v79 = vld [vmem:[#allocation5] sm:$0xff]
      %v80 = vld [vmem:[%s2] sm:$0x1]
      %v82 = vperm.slane %v80, 0
      %v84 = vadd.f32 %v79, %v82
      %v85 = vmax.f32 %v84, 0.0
      %86 = vst [vmem:[#allocation5] sm:$0xff] %v85
    $region25: #{_fc_relu_forward.1} parent=1 // pred_fallthru
      _
    // Predicated region
    $region26: #{_fc_relu_forward.1} parent=1 // pred_check
      _
    $region27: #{_fc_relu_forward.1} parent=1 // pred_check_branch
      %88 = sbr.rel (0) target = $region29
    $region28: #{_fc_relu_forward.1} parent=1 // pred_region
      %90 = vsyncadd [#allocation4], 0
      %s92 = sshll.u32 [#allocation5], 4
      %s93 = int_to_ptr.vmem [resolvable:$true] %s92
      %s94 = sshll.u32 %s3, 4
      %s95 = int_to_ptr.hbm [resolvable:$true] %s94
      %97 = dma.vmem_to_hbm [thread:$0]  %s93, 128, %s95, [#allocation4]
    $region29: #{_fc_relu_forward.1} parent=1 // pred_fallthru
      _
    // Predicated region
    $region30: #{_fc_relu_forward.1} parent=1 // pred_check
      _
    $region31: #{_fc_relu_forward.1} parent=1 // pred_check_branch
      %99 = sbr.rel (0) target = $region33
    $region32: #{_fc_relu_forward.1} parent=1 // pred_region
      %101 = dma.done [#allocation4], 128
    $region33: #{_fc_relu_forward.1} parent=1 // pred_fallthru
      _
    %102 = vsyncpa [#allocation3], 1
    %103 = vsyncpa [#allocation4], 1

</llo_original>
